<compile_context>
chip_gen: v7x
topology: tpu7x:2x2x1
jax: 0.10.0
libtpu: 0.0.40
codegen_flags: <defaults>
</compile_context>

<pallas_src>
import jax
import jax.numpy as jnp
from jax.experimental import pallas as pl
from jax.experimental.pallas import tpu as pltpu

IN_DIM = 3
HID_DIM = 100
OUT_DIM = 3
_SUBLANE = 8
_LANE = 128


def mlp_kernel(xt_ref, w1c0_ref, w1c1_ref, w1c2_ref, b1_ref, w2p_ref, b2_ref,
               o_ref):
    # xt_ref:  (3, TB)        batch on lanes
    # w1cK_ref:(100, 1)       k-th column of fc_in.weight
    # b1_ref:  (100, 1)
    # w2p_ref: (8, 100)       fc_out.weight zero-padded to 8 rows
    # b2_ref:  (3, 1)
    # o_ref:   (3, TB)
    xt = xt_ref[...]                                   # (3, TB)

    # First layer: K=3 contraction as VPU broadcast-FMAs (keep MXU free).
    h = (w1c0_ref[...] * xt[0:1, :]
         + w1c1_ref[...] * xt[1:2, :]
         + w1c2_ref[...] * xt[2:3, :]
         + b1_ref[...])                                # (100, TB) f32
    h = jnp.tanh(h)                                    # EUP

    # Second layer: K=100 contraction on the MXU; bias folded into the store.
    y = jnp.dot(w2p_ref[...], h, preferred_element_type=jnp.float32)  # (8, TB)
    o_ref[...] = (y[0:OUT_DIM, :] + b2_ref[...]).astype(o_ref.dtype)


def net_forward(x, w1, b1, w2, b2, *, block_b=1024):
    """Forward pass of Net.

    x:  (B, 3)   float32
    w1: (100, 3) = fc_in.weight  (PyTorch (out, in) layout)
    b1: (100,)   = fc_in.bias
    w2: (3, 100) = fc_out.weight
    b2: (3,)     = fc_out.bias
    """
    B = x.shape[0]

    # Pick the batch (lane) tile and pad B up to a multiple of it.
    if B <= block_b:
        tb = max(_LANE, pl.cdiv(B, _LANE) * _LANE)
        b_pad = tb
    else:
        tb = block_b
        b_pad = pl.cdiv(B, tb) * tb

    # Layout plumbing in the wrapper: batch onto the lane axis.
    x_pad = jnp.pad(x, ((0, b_pad - B), (0, 0)))
    xt = x_pad.T                                       # (3, b_pad)

    w1c0 = w1[:, 0:1]                                  # (100, 1)
    w1c1 = w1[:, 1:2]
    w1c2 = w1[:, 2:3]
    b1c = b1.reshape(HID_DIM, 1)                       # (100, 1)
    w2p = jnp.pad(w2, ((0, _SUBLANE - OUT_DIM), (0, 0)))  # (8, 100)
    b2c = b2.reshape(OUT_DIM, 1)                       # (3, 1)

    grid = (b_pad // tb,)
    const = lambda shape: pl.BlockSpec(shape, lambda i: (0, 0))

    yt = pl.pallas_call(
        mlp_kernel,
        out_shape=jax.ShapeDtypeStruct((OUT_DIM, b_pad), x.dtype),
        grid=grid,
        in_specs=[
            pl.BlockSpec((IN_DIM, tb), lambda i: (0, i)),   # xT, streamed
            const((HID_DIM, 1)),                            # w1 col 0 (resident)
            const((HID_DIM, 1)),                            # w1 col 1
            const((HID_DIM, 1)),                            # w1 col 2
            const((HID_DIM, 1)),                            # b1
            const((_SUBLANE, HID_DIM)),                     # w2 (padded)
            const((OUT_DIM, 1)),                            # b2
        ],
        out_specs=pl.BlockSpec((OUT_DIM, tb), lambda i: (0, i)),
        compiler_params=pltpu.CompilerParams(
            dimension_semantics=("parallel",)),
    )(xt, w1c0, w1c1, w1c2, b1c, w2p, b2c)

    return yt.T[:B]                                    # (B, 3)


def init_params(key):
    """PyTorch nn.Linear default init (uniform +/- 1/sqrt(fan_in)),
    weights kept in PyTorch (out, in) layout."""
    k1, k2, k3, k4 = jax.random.split(key, 4)
    bound1 = 1.0 / (IN_DIM ** 0.5)
    bound2 = 1.0 / (HID_DIM ** 0.5)
    w1 = jax.random.uniform(k1, (HID_DIM, IN_DIM), jnp.float32, -bound1, bound1)
    b1 = jax.random.uniform(k2, (HID_DIM,), jnp.float32, -bound1, bound1)
    w2 = jax.random.uniform(k3, (OUT_DIM, HID_DIM), jnp.float32, -bound2, bound2)
    b2 = jax.random.uniform(k4, (OUT_DIM,), jnp.float32, -bound2, bound2)
    return w1, b1, w2, b2


def reference_forward(x, w1, b1, w2, b2):
    hi = jax.lax.Precision.HIGHEST
    h = jnp.tanh(jnp.dot(x, w1.T, precision=hi) + b1)
    return jnp.dot(h, w2.T, precision=hi) + b2


if __name__ == "__main__":
    key = jax.random.PRNGKey(0)
    kx1, kx2, kp = jax.random.split(key, 3)

    w1, b1, w2, b2 = init_params(kp)

    # Small batch (single-query IK use case): one 128-lane tile, padded.
    x_small = jax.random.normal(kx1, (8, IN_DIM), dtype=jnp.float32)
    out_small = jax.block_until_ready(net_forward(x_small, w1, b1, w2, b2))
    ref_small = reference_forward(x_small, w1, b1, w2, b2)
    assert out_small.shape == (8, OUT_DIM)
    assert jnp.allclose(out_small, ref_small, atol=1e-4, rtol=1e-4), \
        "small-batch mismatch vs pure-JAX reference"

    # Larger, non-multiple batch: exercises the pipelined multi-step grid and
    # the tail padding path (B=2500 -> 3 grid steps of 1024 lanes).
    x_big = jax.random.normal(kx2, (2500, IN_DIM), dtype=jnp.float32)
    out_big = jax.block_until_ready(net_forward(x_big, w1, b1, w2, b2))
    ref_big = reference_forward(x_big, w1, b1, w2, b2)
    assert out_big.shape == (2500, OUT_DIM)
    assert jnp.allclose(out_big, ref_big, atol=1e-4, rtol=1e-4), \
        "large-batch mismatch vs pure-JAX reference"

    print("KERNEL_OK")
</pallas_src>

<mosaic_0001>
module attributes {stable_mosaic.version = 11 : i64} {
  func.func @mlp_kernel(%arg0: i32, %arg1: memref<3x128xf32, #tpu.memory_space<vmem>>, %arg2: memref<100x1xf32, #tpu.memory_space<vmem>>, %arg3: memref<100x1xf32, #tpu.memory_space<vmem>>, %arg4: memref<100x1xf32, #tpu.memory_space<vmem>>, %arg5: memref<100x1xf32, #tpu.memory_space<vmem>>, %arg6: memref<8x100xf32, #tpu.memory_space<vmem>>, %arg7: memref<3x1xf32, #tpu.memory_space<vmem>>, %arg8: memref<3x128xf32, #tpu.memory_space<vmem>>) attributes {dimension_semantics = [#tpu.dimension_semantics<parallel>], iteration_bounds = array<i64: 1>, scalar_prefetch = 0 : i64, scratch_operands = 0 : i64, tpu.core_type = #tpu.core_type<tc>, window_params = [{transform_indices = @transform_0, window_bounds = array<i64: 3, 128>}, {pipeline_mode = #tpu.pipeline_mode<synchronous>, transform_indices = @transform_1, window_bounds = array<i64: 100, 1>}, {pipeline_mode = #tpu.pipeline_mode<synchronous>, transform_indices = @transform_2, window_bounds = array<i64: 100, 1>}, {pipeline_mode = #tpu.pipeline_mode<synchronous>, transform_indices = @transform_3, window_bounds = array<i64: 100, 1>}, {pipeline_mode = #tpu.pipeline_mode<synchronous>, transform_indices = @transform_4, window_bounds = array<i64: 100, 1>}, {pipeline_mode = #tpu.pipeline_mode<synchronous>, transform_indices = @transform_5, window_bounds = array<i64: 8, 100>}, {pipeline_mode = #tpu.pipeline_mode<synchronous>, transform_indices = @transform_6, window_bounds = array<i64: 3, 1>}, {transform_indices = @transform_7, window_bounds = array<i64: 3, 128>}]} {
    %c0 = arith.constant 0 : index
    %c0_0 = arith.constant 0 : index
    %0 = vector.load %arg1[%c0, %c0_0] : memref<3x128xf32, #tpu.memory_space<vmem>>, vector<3x128xf32>
    %c0_1 = arith.constant 0 : index
    %c0_2 = arith.constant 0 : index
    %1 = vector.load %arg2[%c0_1, %c0_2] : memref<100x1xf32, #tpu.memory_space<vmem>>, vector<100x1xf32>
    %2 = vector.extract_strided_slice %0 {offsets = [0, 0], sizes = [1, 128], strides = [1, 1]} : vector<3x128xf32> to vector<1x128xf32>
    %3 = vector.broadcast %1 : vector<100x1xf32> to vector<100x128xf32>
    %4 = vector.broadcast %2 : vector<1x128xf32> to vector<100x128xf32>
    %5 = arith.mulf %3, %4 : vector<100x128xf32>
    %c0_3 = arith.constant 0 : index
    %c0_4 = arith.constant 0 : index
    %6 = vector.load %arg3[%c0_3, %c0_4] : memref<100x1xf32, #tpu.memory_space<vmem>>, vector<100x1xf32>
    %7 = vector.extract_strided_slice %0 {offsets = [1, 0], sizes = [1, 128], strides = [1, 1]} : vector<3x128xf32> to vector<1x128xf32>
    %8 = vector.broadcast %6 : vector<100x1xf32> to vector<100x128xf32>
    %9 = vector.broadcast %7 : vector<1x128xf32> to vector<100x128xf32>
    %10 = arith.mulf %8, %9 : vector<100x128xf32>
    %11 = arith.addf %5, %10 : vector<100x128xf32>
    %c0_5 = arith.constant 0 : index
    %c0_6 = arith.constant 0 : index
    %12 = vector.load %arg4[%c0_5, %c0_6] : memref<100x1xf32, #tpu.memory_space<vmem>>, vector<100x1xf32>
    %13 = vector.extract_strided_slice %0 {offsets = [2, 0], sizes = [1, 128], strides = [1, 1]} : vector<3x128xf32> to vector<1x128xf32>
    %14 = vector.broadcast %12 : vector<100x1xf32> to vector<100x128xf32>
    %15 = vector.broadcast %13 : vector<1x128xf32> to vector<100x128xf32>
    %16 = arith.mulf %14, %15 : vector<100x128xf32>
    %17 = arith.addf %11, %16 : vector<100x128xf32>
    %c0_7 = arith.constant 0 : index
    %c0_8 = arith.constant 0 : index
    %18 = vector.load %arg5[%c0_7, %c0_8] : memref<100x1xf32, #tpu.memory_space<vmem>>, vector<100x1xf32>
    %19 = vector.broadcast %18 : vector<100x1xf32> to vector<100x128xf32>
    %20 = arith.addf %17, %19 : vector<100x128xf32>
    %21 = math.tanh %20 : vector<100x128xf32>
    %c0_9 = arith.constant 0 : index
    %c0_10 = arith.constant 0 : index
    %22 = vector.load %arg6[%c0_9, %c0_10] : memref<8x100xf32, #tpu.memory_space<vmem>>, vector<8x100xf32>
    %cst = arith.constant dense<0.000000e+00> : vector<8x128xf32>
    %23 = tpu.matmul %22, %21, %cst {dimension_numbers = #tpu.dot_dimension_numbers<[1], [0], [0], [1], [0, 0, 1, 1], [], []>} : vector<8x100xf32>, vector<100x128xf32>, vector<8x128xf32> -> vector<8x128xf32>
    %24 = vector.extract_strided_slice %23 {offsets = [0, 0], sizes = [3, 128], strides = [1, 1]} : vector<8x128xf32> to vector<3x128xf32>
    %c0_11 = arith.constant 0 : index
    %c0_12 = arith.constant 0 : index
    %25 = vector.load %arg7[%c0_11, %c0_12] : memref<3x1xf32, #tpu.memory_space<vmem>>, vector<3x1xf32>
    %26 = vector.broadcast %25 : vector<3x1xf32> to vector<3x128xf32>
    %27 = arith.addf %24, %26 : vector<3x128xf32>
    %c0_13 = arith.constant 0 : index
    %c0_14 = arith.constant 0 : index
    %28 = vector.load %arg8[%c0_13, %c0_14] : memref<3x128xf32, #tpu.memory_space<vmem>>, vector<3x128xf32>
    tpu.vector_store %arg8[%c0_13, %c0_14], %27 {strides = array<i32>} : memref<3x128xf32, #tpu.memory_space<vmem>>, vector<3x128xf32>,
    return
  }
  func.func @transform_0(%arg0: i32) -> (i32, i32) {
    %c0_i32 = arith.constant 0 : i32
    %c0_i32_0 = arith.constant 0 : i32
    return %c0_i32, %arg0 : i32, i32
  }
  func.func @transform_1(%arg0: i32) -> (i32, i32) {
    %c0_i32 = arith.constant 0 : i32
    %c0_i32_0 = arith.constant 0 : i32
    %c0_i32_1 = arith.constant 0 : i32
    return %c0_i32, %c0_i32_0 : i32, i32
  }
  func.func @transform_2(%arg0: i32) -> (i32, i32) {
    %c0_i32 = arith.constant 0 : i32
    %c0_i32_0 = arith.constant 0 : i32
    %c0_i32_1 = arith.constant 0 : i32
    return %c0_i32, %c0_i32_0 : i32, i32
  }
  func.func @transform_3(%arg0: i32) -> (i32, i32) {
    %c0_i32 = arith.constant 0 : i32
    %c0_i32_0 = arith.constant 0 : i32
    %c0_i32_1 = arith.constant 0 : i32
    return %c0_i32, %c0_i32_0 : i32, i32
  }
  func.func @transform_4(%arg0: i32) -> (i32, i32) {
    %c0_i32 = arith.constant 0 : i32
    %c0_i32_0 = arith.constant 0 : i32
    %c0_i32_1 = arith.constant 0 : i32
    return %c0_i32, %c0_i32_0 : i32, i32
  }
  func.func @transform_5(%arg0: i32) -> (i32, i32) {
    %c0_i32 = arith.constant 0 : i32
    %c0_i32_0 = arith.constant 0 : i32
    %c0_i32_1 = arith.constant 0 : i32
    return %c0_i32, %c0_i32_0 : i32, i32
  }
  func.func @transform_6(%arg0: i32) -> (i32, i32) {
    %c0_i32 = arith.constant 0 : i32
    %c0_i32_0 = arith.constant 0 : i32
    %c0_i32_1 = arith.constant 0 : i32
    return %c0_i32, %c0_i32_0 : i32, i32
  }
  func.func @transform_7(%arg0: i32) -> (i32, i32) {
    %c0_i32 = arith.constant 0 : i32
    %c0_i32_0 = arith.constant 0 : i32
    return %c0_i32, %arg0 : i32, i32
  }
}

</mosaic_0001>

<llo_original>
// kernel: tpu_custom_call.1
$region0: #{tpu_custom_call.1}
  #allocation0 [shape = 'u32[]', space=smem, size = 0x4, offset = 0x4, fixed_abs, tag = 'smem constant byte address 0x4 - core index']
  #allocation1 [shape = 'u32[144,128]{1,0:T(1,128)}', space=vmem, size = 0x12000, scoped, tag = 'internal scratch']
  %s0 = inlined_call_operand.vmem [shape: f32[3,128], index: 0, kind: input, shape index: {}]
  %s1 = inlined_call_operand.vmem [shape: f32[100,1], index: 1, kind: input, shape index: {}]
  %s2 = inlined_call_operand.vmem [shape: f32[100,1], index: 2, kind: input, shape index: {}]
  %s3 = inlined_call_operand.vmem [shape: f32[100,1], index: 3, kind: input, shape index: {}]
  %s4 = inlined_call_operand.vmem [shape: f32[100,1], index: 4, kind: input, shape index: {}]
  %s5 = inlined_call_operand.vmem [shape: f32[8,100], index: 5, kind: input, shape index: {}]
  %s6 = inlined_call_operand.vmem [shape: f32[3,1], index: 6, kind: input, shape index: {}]
  %s7 = inlined_call_operand.hbm [shape: f32[3,128], index: 7, kind: output, shape index: {}]
  %s8 = sld [smem:[#allocation0]]
  $region38: #{tpu_custom_call.1} parent=0
    _
  %s10 = ssub.s32 1, %s8
  %s11 = scalar_select 0, %s10, %s8
  $region1: #{tpu_custom_call.1} parent=0
    #allocation2 [shape = 'u8[2048]{0}', space=vmem, size = 0x800, scoped, tag = 'output window, operand 0, single buffered']
    #allocation3 [shape = 's32[1]{0}', space=sflag, size = 0x4, scoped, tag = 'scoped memory for tpu_custom_call.1']
    %12 = vsyncpa [#allocation3], 0
    // Predicated region
    $region2: #{tpu_custom_call.1} parent=1 // pred_check
      _
    $region3: #{tpu_custom_call.1} parent=1 // pred_check_branch
      %14 = sbr.rel (0) target = $region5
    $region4: #{tpu_custom_call.1} parent=1 // pred_region
      _
    $region5: #{tpu_custom_call.1} parent=1 // pred_fallthru
      _
    // Predicated region
    $region6: #{tpu_custom_call.1} parent=1 // pred_check
      _
    $region7: #{tpu_custom_call.1} parent=1 // pred_check_branch
      %16 = sbr.rel (0) target = $region9
    $region8: #{tpu_custom_call.1} parent=1 // pred_region
      _
    $region9: #{tpu_custom_call.1} parent=1 // pred_fallthru
      _
    // Predicated region
    $region10: #{tpu_custom_call.1} parent=1 // pred_check
      _
    $region11: #{tpu_custom_call.1} parent=1 // pred_check_branch
      %18 = sbr.rel (0) target = $region13
    $region12: #{tpu_custom_call.1} parent=1 // pred_region
      _
    $region13: #{tpu_custom_call.1} parent=1 // pred_fallthru
      _
    // Predicated region
    $region14: #{tpu_custom_call.1} parent=1 // pred_check
      _
    $region15: #{tpu_custom_call.1} parent=1 // pred_check_branch
      %20 = sbr.rel (0) target = $region17
    $region16: #{tpu_custom_call.1} parent=1 // pred_region
      _
    $region17: #{tpu_custom_call.1} parent=1 // pred_fallthru
      _
    // Predicated region
    $region18: #{tpu_custom_call.1} parent=1 // pred_check
      _
    $region19: #{tpu_custom_call.1} parent=1 // pred_check_branch
      %22 = sbr.rel (0) target = $region21
    $region20: #{tpu_custom_call.1} parent=1 // pred_region
      _
    $region21: #{tpu_custom_call.1} parent=1 // pred_fallthru
      _
    // Predicated region
    $region22: #{tpu_custom_call.1} parent=1 // pred_check
      _
    $region23: #{tpu_custom_call.1} parent=1 // pred_check_branch
      %24 = sbr.rel (0) target = $region25
    $region24: #{tpu_custom_call.1} parent=1 // pred_region
      _
    $region25: #{tpu_custom_call.1} parent=1 // pred_fallthru
      _
    // Predicated region
    $region26: #{tpu_custom_call.1} parent=1 // pred_check
      _
    $region27: #{tpu_custom_call.1} parent=1 // pred_check_branch
      %26 = sbr.rel (0) target = $region29
    $region28: #{tpu_custom_call.1} parent=1 // pred_region
      _
    $region29: #{tpu_custom_call.1} parent=1 // pred_fallthru
      _
    %v27 = vld [vmem:[%s0] sm:$0x7]
    %v28 = vld [vmem:[%s1] sm:$0xff]
    %v29 = vld [vmem:[%s1 + $0x8] sm:$0xff]
    %v30 = vld [vmem:[%s1 + $0x10] sm:$0xff]
    %v31 = vld [vmem:[%s1 + $0x18] sm:$0xff]
    %v32 = vld [vmem:[%s1 + $0x20] sm:$0xff]
    %v33 = vld [vmem:[%s1 + $0x28] sm:$0xff]
    %v34 = vld [vmem:[%s1 + $0x30] sm:$0xff]
    %v35 = vld [vmem:[%s1 + $0x38] sm:$0xff]
    %v36 = vld [vmem:[%s1 + $0x40] sm:$0xff]
    %v37 = vld [vmem:[%s1 + $0x48] sm:$0xff]
    %v38 = vld [vmem:[%s1 + $0x50] sm:$0xff]
    %v39 = vld [vmem:[%s1 + $0x58] sm:$0xff]
    %v40 = vld [vmem:[%s1 + $0x60] sm:$0xf]
    %42 = vset.pattern.permute.xlu0 0
    %43 = vperm.xlu0 %42, %v28
    %v44 = vpop.permute.xlu0 %43
    %47 = vset.pattern.permute.xlu0 0
    %48 = vperm.xlu0 %47, %v29
    %v49 = vpop.permute.xlu0 %48
    %52 = vset.pattern.permute.xlu0 0
    %53 = vperm.xlu0 %52, %v30
    %v54 = vpop.permute.xlu0 %53
    %57 = vset.pattern.permute.xlu0 0
    %58 = vperm.xlu0 %57, %v31
    %v59 = vpop.permute.xlu0 %58
    %62 = vset.pattern.permute.xlu0 0
    %63 = vperm.xlu0 %62, %v32
    %v64 = vpop.permute.xlu0 %63
    %67 = vset.pattern.permute.xlu0 0
    %68 = vperm.xlu0 %67, %v33
    %v69 = vpop.permute.xlu0 %68
    %72 = vset.pattern.permute.xlu0 0
    %73 = vperm.xlu0 %72, %v34
    %v74 = vpop.permute.xlu0 %73
    %77 = vset.pattern.permute.xlu0 0
    %78 = vperm.xlu0 %77, %v35
    %v79 = vpop.permute.xlu0 %78
    %82 = vset.pattern.permute.xlu0 0
    %83 = vperm.xlu0 %82, %v36
    %v84 = vpop.permute.xlu0 %83
    %87 = vset.pattern.permute.xlu0 0
    %88 = vperm.xlu0 %87, %v37
    %v89 = vpop.permute.xlu0 %88
    %92 = vset.pattern.permute.xlu0 0
    %93 = vperm.xlu0 %92, %v38
    %v94 = vpop.permute.xlu0 %93
    %97 = vset.pattern.permute.xlu0 0
    %98 = vperm.xlu0 %97, %v39
    %v99 = vpop.permute.xlu0 %98
    %102 = vset.pattern.permute.xlu0 0
    %103 = vperm.xlu0 %102, %v40
    %v104 = vpop.permute.xlu0 %103
    %v106 = vlaneseq
    %v107 = vshrl.u32 %v106, 7
    %v108 = vsub.s32 0, %v107
    %v109 = vrot.slane %v27, %v108
    %v110 = vmul.f32 %v44, %v109
    %v111 = vmul.f32 %v49, %v109
    %v112 = vmul.f32 %v54, %v109
    %v113 = vmul.f32 %v59, %v109
    %v114 = vmul.f32 %v64, %v109
    %v115 = vmul.f32 %v69, %v109
    %v116 = vmul.f32 %v74, %v109
    %v117 = vmul.f32 %v79, %v109
    %v118 = vmul.f32 %v84, %v109
    %v119 = vmul.f32 %v89, %v109
    %v120 = vmul.f32 %v94, %v109
    %v121 = vmul.f32 %v99, %v109
    %v122 = vmul.f32 %v104, %v109
    %v123 = vld [vmem:[%s2] sm:$0xff]
    %v124 = vld [vmem:[%s2 + $0x8] sm:$0xff]
    %v125 = vld [vmem:[%s2 + $0x10] sm:$0xff]
    %v126 = vld [vmem:[%s2 + $0x18] sm:$0xff]
    %v127 = vld [vmem:[%s2 + $0x20] sm:$0xff]
    %v128 = vld [vmem:[%s2 + $0x28] sm:$0xff]
    %v129 = vld [vmem:[%s2 + $0x30] sm:$0xff]
    %v130 = vld [vmem:[%s2 + $0x38] sm:$0xff]
    %v131 = vld [vmem:[%s2 + $0x40] sm:$0xff]
    %v132 = vld [vmem:[%s2 + $0x48] sm:$0xff]
    %v133 = vld [vmem:[%s2 + $0x50] sm:$0xff]
    %v134 = vld [vmem:[%s2 + $0x58] sm:$0xff]
    %v135 = vld [vmem:[%s2 + $0x60] sm:$0xf]
    %137 = vset.pattern.permute.xlu0 0
    %138 = vperm.xlu0 %137, %v123
    %v139 = vpop.permute.xlu0 %138
    %142 = vset.pattern.permute.xlu0 0
    %143 = vperm.xlu0 %142, %v124
    %v144 = vpop.permute.xlu0 %143
    %147 = vset.pattern.permute.xlu0 0
    %148 = vperm.xlu0 %147, %v125
    %v149 = vpop.permute.xlu0 %148
    %152 = vset.pattern.permute.xlu0 0
    %153 = vperm.xlu0 %152, %v126
    %v154 = vpop.permute.xlu0 %153
    %157 = vset.pattern.permute.xlu0 0
    %158 = vperm.xlu0 %157, %v127
    %v159 = vpop.permute.xlu0 %158
    %162 = vset.pattern.permute.xlu0 0
    %163 = vperm.xlu0 %162, %v128
    %v164 = vpop.permute.xlu0 %163
    %167 = vset.pattern.permute.xlu0 0
    %168 = vperm.xlu0 %167, %v129
    %v169 = vpop.permute.xlu0 %168
    %172 = vset.pattern.permute.xlu0 0
    %173 = vperm.xlu0 %172, %v130
    %v174 = vpop.permute.xlu0 %173
    %177 = vset.pattern.permute.xlu0 0
    %178 = vperm.xlu0 %177, %v131
    %v179 = vpop.permute.xlu0 %178
    %182 = vset.pattern.permute.xlu0 0
    %183 = vperm.xlu0 %182, %v132
    %v184 = vpop.permute.xlu0 %183
    %187 = vset.pattern.permute.xlu0 0
    %188 = vperm.xlu0 %187, %v133
    %v189 = vpop.permute.xlu0 %188
    %192 = vset.pattern.permute.xlu0 0
    %193 = vperm.xlu0 %192, %v134
    %v194 = vpop.permute.xlu0 %193
    %197 = vset.pattern.permute.xlu0 0
    %198 = vperm.xlu0 %197, %v135
    %v199 = vpop.permute.xlu0 %198
    %v201 = vlaneseq
    %v202 = vshrl.u32 %v201, 7
    %v203 = vsub.s32 1, %v202
    %v204 = vrot.slane %v27, %v203
    %v205 = vmul.f32 %v139, %v204
    %v206 = vmul.f32 %v144, %v204
    %v207 = vmul.f32 %v149, %v204
    %v208 = vmul.f32 %v154, %v204
    %v209 = vmul.f32 %v159, %v204
    %v210 = vmul.f32 %v164, %v204
    %v211 = vmul.f32 %v169, %v204
    %v212 = vmul.f32 %v174, %v204
    %v213 = vmul.f32 %v179, %v204
    %v214 = vmul.f32 %v184, %v204
    %v215 = vmul.f32 %v189, %v204
    %v216 = vmul.f32 %v194, %v204
    %v217 = vmul.f32 %v199, %v204
    %v218 = vadd.f32 %v110, %v205
    %v219 = vadd.f32 %v111, %v206
    %v220 = vadd.f32 %v112, %v207
    %v221 = vadd.f32 %v113, %v208
    %v222 = vadd.f32 %v114, %v209
    %v223 = vadd.f32 %v115, %v210
    %v224 = vadd.f32 %v116, %v211
    %v225 = vadd.f32 %v117, %v212
    %v226 = vadd.f32 %v118, %v213
    %v227 = vadd.f32 %v119, %v214
    %v228 = vadd.f32 %v120, %v215
    %v229 = vadd.f32 %v121, %v216
    %v230 = vadd.f32 %v122, %v217
    %v231 = vld [vmem:[%s3] sm:$0xff]
    %v232 = vld [vmem:[%s3 + $0x8] sm:$0xff]
    %v233 = vld [vmem:[%s3 + $0x10] sm:$0xff]
    %v234 = vld [vmem:[%s3 + $0x18] sm:$0xff]
    %v235 = vld [vmem:[%s3 + $0x20] sm:$0xff]
    %v236 = vld [vmem:[%s3 + $0x28] sm:$0xff]
    %v237 = vld [vmem:[%s3 + $0x30] sm:$0xff]
    %v238 = vld [vmem:[%s3 + $0x38] sm:$0xff]
    %v239 = vld [vmem:[%s3 + $0x40] sm:$0xff]
    %v240 = vld [vmem:[%s3 + $0x48] sm:$0xff]
    %v241 = vld [vmem:[%s3 + $0x50] sm:$0xff]
    %v242 = vld [vmem:[%s3 + $0x58] sm:$0xff]
    %v243 = vld [vmem:[%s3 + $0x60] sm:$0xf]
    %245 = vset.pattern.permute.xlu0 0
    %246 = vperm.xlu0 %245, %v231
    %v247 = vpop.permute.xlu0 %246
    %250 = vset.pattern.permute.xlu0 0
    %251 = vperm.xlu0 %250, %v232
    %v252 = vpop.permute.xlu0 %251
    %255 = vset.pattern.permute.xlu0 0
    %256 = vperm.xlu0 %255, %v233
    %v257 = vpop.permute.xlu0 %256
    %260 = vset.pattern.permute.xlu0 0
    %261 = vperm.xlu0 %260, %v234
    %v262 = vpop.permute.xlu0 %261
    %265 = vset.pattern.permute.xlu0 0
    %266 = vperm.xlu0 %265, %v235
    %v267 = vpop.permute.xlu0 %266
    %270 = vset.pattern.permute.xlu0 0
    %271 = vperm.xlu0 %270, %v236
    %v272 = vpop.permute.xlu0 %271
    %275 = vset.pattern.permute.xlu0 0
    %276 = vperm.xlu0 %275, %v237
    %v277 = vpop.permute.xlu0 %276
    %280 = vset.pattern.permute.xlu0 0
    %281 = vperm.xlu0 %280, %v238
    %v282 = vpop.permute.xlu0 %281
    %285 = vset.pattern.permute.xlu0 0
    %286 = vperm.xlu0 %285, %v239
    %v287 = vpop.permute.xlu0 %286
    %290 = vset.pattern.permute.xlu0 0
    %291 = vperm.xlu0 %290, %v240
    %v292 = vpop.permute.xlu0 %291
    %295 = vset.pattern.permute.xlu0 0
    %296 = vperm.xlu0 %295, %v241
    %v297 = vpop.permute.xlu0 %296
    %300 = vset.pattern.permute.xlu0 0
    %301 = vperm.xlu0 %300, %v242
    %v302 = vpop.permute.xlu0 %301
    %305 = vset.pattern.permute.xlu0 0
    %306 = vperm.xlu0 %305, %v243
    %v307 = vpop.permute.xlu0 %306
    %v309 = vlaneseq
    %v310 = vshrl.u32 %v309, 7
    %v311 = vsub.s32 2, %v310
    %v312 = vrot.slane %v27, %v311
    %v313 = vmul.f32 %v247, %v312
    %v314 = vmul.f32 %v252, %v312
    %v315 = vmul.f32 %v257, %v312
    %v316 = vmul.f32 %v262, %v312
    %v317 = vmul.f32 %v267, %v312
    %v318 = vmul.f32 %v272, %v312
    %v319 = vmul.f32 %v277, %v312
    %v320 = vmul.f32 %v282, %v312
    %v321 = vmul.f32 %v287, %v312
    %v322 = vmul.f32 %v292, %v312
    %v323 = vmul.f32 %v297, %v312
    %v324 = vmul.f32 %v302, %v312
    %v325 = vmul.f32 %v307, %v312
    %v326 = vadd.f32 %v218, %v313
    %v327 = vadd.f32 %v219, %v314
    %v328 = vadd.f32 %v220, %v315
    %v329 = vadd.f32 %v221, %v316
    %v330 = vadd.f32 %v222, %v317
    %v331 = vadd.f32 %v223, %v318
    %v332 = vadd.f32 %v224, %v319
    %v333 = vadd.f32 %v225, %v320
    %v334 = vadd.f32 %v226, %v321
    %v335 = vadd.f32 %v227, %v322
    %v336 = vadd.f32 %v228, %v323
    %v337 = vadd.f32 %v229, %v324
    %v338 = vadd.f32 %v230, %v325
    %v339 = vld [vmem:[%s4] sm:$0xff]
    %v340 = vld [vmem:[%s4 + $0x8] sm:$0xff]
    %v341 = vld [vmem:[%s4 + $0x10] sm:$0xff]
    %v342 = vld [vmem:[%s4 + $0x18] sm:$0xff]
    %v343 = vld [vmem:[%s4 + $0x20] sm:$0xff]
    %v344 = vld [vmem:[%s4 + $0x28] sm:$0xff]
    %v345 = vld [vmem:[%s4 + $0x30] sm:$0xff]
    %v346 = vld [vmem:[%s4 + $0x38] sm:$0xff]
    %v347 = vld [vmem:[%s4 + $0x40] sm:$0xff]
    %v348 = vld [vmem:[%s4 + $0x48] sm:$0xff]
    %v349 = vld [vmem:[%s4 + $0x50] sm:$0xff]
    %v350 = vld [vmem:[%s4 + $0x58] sm:$0xff]
    %v351 = vld [vmem:[%s4 + $0x60] sm:$0xf]
    %353 = vset.pattern.permute.xlu0 0
    %354 = vperm.xlu0 %353, %v339
    %v355 = vpop.permute.xlu0 %354
    %358 = vset.pattern.permute.xlu0 0
    %359 = vperm.xlu0 %358, %v340
    %v360 = vpop.permute.xlu0 %359
    %363 = vset.pattern.permute.xlu0 0
    %364 = vperm.xlu0 %363, %v341
    %v365 = vpop.permute.xlu0 %364
    %368 = vset.pattern.permute.xlu0 0
    %369 = vperm.xlu0 %368, %v342
    %v370 = vpop.permute.xlu0 %369
    %373 = vset.pattern.permute.xlu0 0
    %374 = vperm.xlu0 %373, %v343
    %v375 = vpop.permute.xlu0 %374
    %378 = vset.pattern.permute.xlu0 0
    %379 = vperm.xlu0 %378, %v344
    %v380 = vpop.permute.xlu0 %379
    %383 = vset.pattern.permute.xlu0 0
    %384 = vperm.xlu0 %383, %v345
    %v385 = vpop.permute.xlu0 %384
    %388 = vset.pattern.permute.xlu0 0
    %389 = vperm.xlu0 %388, %v346
    %v390 = vpop.permute.xlu0 %389
    %393 = vset.pattern.permute.xlu0 0
    %394 = vperm.xlu0 %393, %v347
    %v395 = vpop.permute.xlu0 %394
    %398 = vset.pattern.permute.xlu0 0
    %399 = vperm.xlu0 %398, %v348
    %v400 = vpop.permute.xlu0 %399
    %403 = vset.pattern.permute.xlu0 0
    %404 = vperm.xlu0 %403, %v349
    %v405 = vpop.permute.xlu0 %404
    %408 = vset.pattern.permute.xlu0 0
    %409 = vperm.xlu0 %408, %v350
    %v410 = vpop.permute.xlu0 %409
    %413 = vset.pattern.permute.xlu0 0
    %414 = vperm.xlu0 %413, %v351
    %v415 = vpop.permute.xlu0 %414
    %v417 = vadd.f32 %v326, %v355
    %v418 = vadd.f32 %v327, %v360
    %v419 = vadd.f32 %v328, %v365
    %v420 = vadd.f32 %v329, %v370
    %v421 = vadd.f32 %v330, %v375
    %v422 = vadd.f32 %v331, %v380
    %v423 = vadd.f32 %v332, %v385
    %v424 = vadd.f32 %v333, %v390
    %v425 = vadd.f32 %v334, %v395
    %v426 = vadd.f32 %v335, %v400
    %v427 = vadd.f32 %v336, %v405
    %v428 = vadd.f32 %v337, %v410
    %v429 = vadd.f32 %v338, %v415
    %v430 = vtanh.pop %v417
    %v431 = vtanh.pop %v418
    %v432 = vtanh.pop %v419
    %v433 = vtanh.pop %v420
    %v434 = vtanh.pop %v421
    %v435 = vtanh.pop %v422
    %v436 = vtanh.pop %v423
    %v437 = vtanh.pop %v424
    %v438 = vtanh.pop %v425
    %v439 = vtanh.pop %v426
    %v440 = vtanh.pop %v427
    %v441 = vtanh.pop %v428
    %v442 = vtanh.pop %v429
    %v443 = vld [vmem:[%s5] sm:$0xff]
    %vm444 = vcmask 818176
    %v446 = vsel %vm444, %v443, 0
    %vm448 = vcmask 1043456
    %v450 = vsel %vm448, %v442, 0
    %452 = vmatprep.subr.mxu0 0.0
    %453 = vmatpush1.msra.mxu0 %v430
    %454 = vmatprep.subr.mxu0 0.0
    %455 = vmatpush1.msra.mxu0 %v431
    %456 = vmatprep.subr.mxu0 0.0
    %457 = vmatpush1.msra.mxu0 %v432
    %458 = vmatprep.subr.mxu0 0.0
    %459 = vmatpush1.msra.mxu0 %v433
    %460 = vmatprep.subr.mxu0 0.0
    %461 = vmatpush1.msra.mxu0 %v434
    %462 = vmatprep.subr.mxu0 0.0
    %463 = vmatpush1.msra.mxu0 %v435
    %464 = vmatprep.subr.mxu0 0.0
    %465 = vmatpush1.msra.mxu0 %v436
    %466 = vmatprep.subr.mxu0 0.0
    %467 = vmatpush1.msra.mxu0 %v437
    %468 = vmatprep.subr.mxu0 0.0
    %469 = vmatpush1.msra.mxu0 %v438
    %470 = vmatprep.subr.mxu0 0.0
    %471 = vmatpush1.msra.mxu0 %v439
    %472 = vmatprep.subr.mxu0 0.0
    %473 = vmatpush1.msra.mxu0 %v440
    %474 = vmatprep.subr.mxu0 0.0
    %475 = vmatpush1.msra.mxu0 %v441
    %476 = vmatprep.subr.mxu0 0.0
    %477 = vmatpush1.msra.mxu0 %v450
    %478 = vmatprep.subr.mxu0 0.0
    %479 = vmatpush1.msra.mxu0 0.0
    %480 = vmatprep.subr.mxu0 0.0
    %481 = vmatpush1.msra.mxu0 0.0
    %482 = vmatprep.subr.mxu0 0.0
    %483 = vmatpush1.msra.mxu0 0.0
    %484 = vmatprep.subr.mxu0 0.0
    %485 = vmatpush1.msra.mxu0 0.0
    %486 = vmatprep.subr.mxu0 0.0
    %487 = vmatpush1.msra.mxu0 0.0
    %488 = vmatprep.subr.mxu0 0.0
    %489 = vmatpush1.msra.mxu0 0.0
    %490 = vmatprep.subr.mxu0 0.0
    %491 = vmatpush1.msra.mxu0 0.0
    %492 = vmatprep.subr.mxu0 0.0
    %493 = vmatpush1.msra.mxu0 0.0
    %494 = vmatprep.subr.mxu0 0.0
    %495 = vmatpush1.msra.mxu0 0.0
    %496 = vmatprep.subr.mxu0 0.0
    %497 = vmatpush1.msra.mxu0 0.0
    %498 = vmatprep.subr.mxu0 0.0
    %499 = vmatpush1.msra.mxu0 0.0
    %500 = vmatprep.subr.mxu0 0.0
    %501 = vmatpush1.msra.mxu0 0.0
    %502 = vmatprep.subr.mxu0 0.0
    %503 = vmatpush1.msra.mxu0 0.0
    %504 = vmatprep.subr.mxu0 0.0
    %505 = vmatpush1.msra.mxu0 0.0
    %506 = vmatprep.subr.mxu0 0.0
    %507 = vmatpush1.msra.mxu0 0.0
    %508 = vmatprep.subr.mxu0 0.0
    %509 = vmatpush1.msra.mxu0 0.0
    %510 = vmatprep.subr.mxu0 0.0
    %511 = vmatpush1.msra.mxu0 0.0
    %512 = vmatprep.subr.mxu0 0.0
    %513 = vmatpush1.msra.mxu0 0.0
    %514 = vmatprep.subr.mxu0 0.0
    %515 = vmatpush1.msra.mxu0 0.0
    %516 = vmatprep.mubr.f32.mxu0 0.0
    %517 = vmatmul.mubr.f32.gmra.mrb[0].mxu0 %v446
    %v518 = vpop.f32.mrb[0].mxu0
    %v519 = vadd.f32 0.0, %v518
    %v520 = vpop.f32.mrb[0].mxu0
    %521 = vdwg.mxu0
    %v522 = vld [vmem:[%s6] sm:$0x7]
    %524 = vset.pattern.permute.xlu0 0
    %525 = vperm.xlu0 %524, %v522
    %v526 = vpop.permute.xlu0 %525
    %v528 = vadd.f32 %v519, %v526
    %529 = vst [vmem:[#allocation2] sm:$0x7] %v528
    // Predicated region
    $region30: #{tpu_custom_call.1} parent=1 // pred_check
      _
    $region31: #{tpu_custom_call.1} parent=1 // pred_check_branch
      %531 = sbr.rel (0) target = $region33
    $region32: #{tpu_custom_call.1} parent=1 // pred_region
      %s533 = ssub.s32 64, 64
      %534 = vsyncadd [#allocation3], %s533
      %s536 = sshll.u32 [#allocation2], 4
      %s537 = int_to_ptr.vmem [resolvable:$true] %s536
      %539 = dma.vmem_to_hbm [thread:$0]  %s537, 64, %s7, [#allocation3]
    $region33: #{tpu_custom_call.1} parent=1 // pred_fallthru
      _
    // Predicated region
    $region34: #{tpu_custom_call.1} parent=1 // pred_check
      _
    $region35: #{tpu_custom_call.1} parent=1 // pred_check_branch
      %541 = sbr.rel (0) target = $region37
    $region36: #{tpu_custom_call.1} parent=1 // pred_region
      %542 = dma.done [#allocation3], 64
    $region37: #{tpu_custom_call.1} parent=1 // pred_fallthru
      _
    %543 = vsyncpa [#allocation3], 1

</llo_original>
